<compile_context>
chip_gen: v7x
topology: tpu7x:2x2x1
jax: 0.10.0
libtpu: 0.0.40
codegen_flags: <defaults>
</compile_context>

<pallas_src>
import jax
import jax.numpy as jnp
from jax.experimental import pallas as pl
from jax.experimental.pallas import tpu as pltpu

EPS = 1e-5

_ROLL_SIGN = None   # +1 if pltpu.roll follows jnp.roll semantics, -1 otherwise
_CPARAMS = None


def _detect_roll_convention():
    """Verify pltpu.roll's shift convention once on-device (tiny kernel)."""
    global _ROLL_SIGN
    if _ROLL_SIGN is None:
        def k(x_ref, o_ref):
            o_ref[...] = pltpu.roll(x_ref[...], shift=1, axis=1)
        x = jnp.arange(128, dtype=jnp.float32).reshape(1, 128)
        y = pl.pallas_call(k, out_shape=jax.ShapeDtypeStruct((1, 128), jnp.float32))(x)
        _ROLL_SIGN = 1 if int(y[0, 0]) == 127 else -1
    return _ROLL_SIGN


def _cparams():
    """Per-generation VMEM cap (~3/4 of physical; 48 MiB v7x, 96 MiB v5e/v6e)."""
    global _CPARAMS
    if _CPARAMS is None:
        try:
            cap = pltpu.get_tpu_info().vmem_capacity_bytes
            limit = min(cap * 3 // 4, 112 * 1024 * 1024)
        except Exception:
            limit = 48 * 1024 * 1024
        _CPARAMS = pltpu.CompilerParams(dimension_semantics=("parallel",),
                                        vmem_limit_bytes=int(limit))
    return _CPARAMS


# ----------------------------------------------------------------------------
# In-kernel im2col assembly (3x3 conv, zero pad 1) -- bf16, roll-based taps
# ----------------------------------------------------------------------------
def _border_masks(H, W, HW):
    """Per-tap border masks built in-kernel from a lane iota (no mask DMA)."""
    lane = jax.lax.broadcasted_iota(jnp.int32, (1, HW), 1)
    if W & (W - 1) == 0:
        wofs = jnp.bitwise_and(lane, W - 1)
    else:
        wofs = lane % W  # TODO(synk): non-power-of-two widths take a slower mod path
    row = {-1: lane >= W, 0: None, 1: lane < (H - 1) * W}
    col = {-1: wofs >= 1, 0: None, 1: wofs <= W - 2}
    return row, col


def _fill_col(col_ref, srcs, H, W, masks, sign):
    """Write the (9*Ct, HW) bf16 im2col matrix of a 3x3 pad-1 conv over the
    channel-concatenation of `srcs` into the leading rows of `col_ref`.
    Lane-aligned widths use one XLU roll + one select + one store per tap;
    the center tap skips the mask entirely."""
    HW = srcs[0].shape[-1]
    Ct = sum(s.shape[0] for s in srcs)
    row_m, col_m = masks
    use_roll = (HW % 128 == 0)
    for k in range(9):
        dy, dx = k // 3 - 1, k % 3 - 1
        s = dy * W + dx
        r, c = row_m[dy], col_m[dx]
        m = r if c is None else (c if r is None else jnp.logical_and(r, c))
        o = 0
        for src in srcs:
            C = src.shape[0]
            r0, r1 = k * Ct + o, k * Ct + o + C
            if s == 0:
                col_ref[r0:r1, :] = src if m is None else jnp.where(m, src, 0)
            elif use_roll:
                sh = (-sign * s) % HW
                v = src if sh == 0 else pltpu.roll(src, shift=sh, axis=1)
                col_ref[r0:r1, :] = jnp.where(m, v, 0)
            elif s > 0:   # conservative two-piece store for narrow (sub-128-lane) widths
                col_ref[r0:r1, :HW - s] = jnp.where(m[:, :HW - s], src[:, s:], 0)
                col_ref[r0:r1, HW - s:] = jnp.zeros((C, s), src.dtype)
            else:
                a = -s
                col_ref[r0:r1, :a] = jnp.zeros((C, a), src.dtype)
                col_ref[r0:r1, a:] = jnp.where(m[:, a:], src[:, :HW - a], 0)
            o += C


# ----------------------------------------------------------------------------
# Fused ConvBlockRes kernel (optional input-BN pre-affine and channel concat)
# ----------------------------------------------------------------------------
def conv_block_res(x, bp, H, W, *, pre=None, x2=None):
    """x: (N, C1, H*W).  x2 (optional): second input, channel-concatenated with
    x inside the kernel (decoder skip).  Returns bf16 (N, Cout, H*W)."""
    N, C1, HW = x.shape
    assert HW == H * W
    C2 = 0 if x2 is None else x2.shape[1]
    Ct = C1 + C2
    Cout = bp["w1"].shape[0]
    has_pre, has_x2, has_sc = pre is not None, x2 is not None, "wsc" in bp
    assert has_sc or Ct == Cout
    Cmax = max(Ct, Cout)
    sign = _ROLL_SIGN or 1

    inputs = [x]
    in_specs = [pl.BlockSpec((1, C1, HW), lambda n: (n, 0, 0))]
    if has_x2:
        inputs.append(x2)
        in_specs.append(pl.BlockSpec((1, C2, HW), lambda n: (n, 0, 0)))
    inputs += [bp["w1"], bp["w2"], bp["cvec"]]
    in_specs += [pl.BlockSpec((Cout, 9 * Ct), lambda n: (0, 0)),
                 pl.BlockSpec((Cout, 9 * Cout), lambda n: (0, 0)),
                 pl.BlockSpec((Cout, 8), lambda n: (0, 0))]
    if has_pre:
        inputs.append(pre)
        in_specs.append(pl.BlockSpec((C1, 8), lambda n: (0, 0)))
    if has_sc:
        if has_x2:   # split the 1x1 shortcut so no concat is ever materialized
            inputs += [bp["wsc"][:, :C1], bp["wsc"][:, C1:]]
            in_specs += [pl.BlockSpec((Cout, C1), lambda n: (0, 0)),
                         pl.BlockSpec((Cout, C2), lambda n: (0, 0))]
        else:
            inputs.append(bp["wsc"])
            in_specs.append(pl.BlockSpec((Cout, C1), lambda n: (0, 0)))

    def kernel(*refs):
        it = iter(refs)
        x_ref = next(it)
        x2_ref = next(it) if has_x2 else None
        w1_ref, w2_ref, cvec_ref = next(it), next(it), next(it)
        pre_ref = next(it) if has_pre else None
        wsc1_ref = next(it) if has_sc else None
        wsc2_ref = next(it) if (has_sc and has_x2) else None
        out_ref = next(it)
        col_ref = next(it)

        masks = _border_masks(H, W, HW)

        if has_pre:                                   # folded input BatchNorm
            xv = x_ref[0].astype(jnp.float32) * pre_ref[:, 0:1] + pre_ref[:, 1:2]
            src1 = xv.astype(jnp.bfloat16)
        else:
            src1 = x_ref[0].astype(jnp.bfloat16)
        srcs = [src1] + ([x2_ref[0].astype(jnp.bfloat16)] if has_x2 else [])

        # conv1 (BN1 scale folded into w1) -- shared bf16 col scratch
        _fill_col(col_ref, srcs, H, W, masks, sign)
        h = jnp.dot(w1_ref[...], col_ref[:9 * Ct, :],
                    preferred_element_type=jnp.float32)
        h = jnp.maximum(h + cvec_ref[:, 0:1], 0.0)    # BN1 bias + ReLU (f32)

        # conv2 (BN2 scale folded) -- col scratch reused (first 9*Cout rows)
        _fill_col(col_ref, [h.astype(jnp.bfloat16)], H, W, masks, sign)
        h = jnp.dot(w2_ref[...], col_ref[:9 * Cout, :],
                    preferred_element_type=jnp.float32)
        h = jnp.maximum(h + cvec_ref[:, 1:2], 0.0)    # BN2 bias + ReLU (f32)

        if has_sc:                                    # 1x1 conv shortcut (+ bias)
            sc = jnp.dot(wsc1_ref[...], src1, preferred_element_type=jnp.float32)
            if has_x2:
                sc = sc + jnp.dot(wsc2_ref[...], srcs[1],
                                  preferred_element_type=jnp.float32)
            h = h + sc + cvec_ref[:, 2:3]
        elif has_pre:                                 # identity residual
            h = h + xv
        else:
            h = h + src1.astype(jnp.float32)
        out_ref[0] = h.astype(out_ref.dtype)

    return pl.pallas_call(
        kernel,
        out_shape=jax.ShapeDtypeStruct((N, Cout, HW), jnp.bfloat16),
        grid=(N,),
        in_specs=in_specs,
        out_specs=pl.BlockSpec((1, Cout, HW), lambda n: (n, 0, 0)),
        scratch_shapes=[pltpu.VMEM((9 * Cmax, HW), jnp.bfloat16)],
        compiler_params=_cparams(),
    )(*inputs)


# ----------------------------------------------------------------------------
# Fused single conv3x3 + BN + ReLU (the ConvTranspose2d stage)
# ----------------------------------------------------------------------------
def conv3x3_bn_relu(x, w, bvec, H, W):
    N, Cin, HW = x.shape
    Cout = w.shape[0]
    sign = _ROLL_SIGN or 1

    def kernel(x_ref, w_ref, b_ref, o_ref, col_ref):
        masks = _border_masks(H, W, HW)
        src = x_ref[0].astype(jnp.bfloat16)
        _fill_col(col_ref, [src], H, W, masks, sign)
        h = jnp.dot(w_ref[...], col_ref[...], preferred_element_type=jnp.float32)
        o_ref[0] = jnp.maximum(h + b_ref[:, 0:1], 0.0).astype(o_ref.dtype)

    return pl.pallas_call(
        kernel,
        out_shape=jax.ShapeDtypeStruct((N, Cout, HW), jnp.bfloat16),
        grid=(N,),
        in_specs=[pl.BlockSpec((1, Cin, HW), lambda n: (n, 0, 0)),
                  pl.BlockSpec((Cout, 9 * Cin), lambda n: (0, 0)),
                  pl.BlockSpec((Cout, 8), lambda n: (0, 0))],
        out_specs=pl.BlockSpec((1, Cout, HW), lambda n: (n, 0, 0)),
        scratch_shapes=[pltpu.VMEM((9 * Cin, HW), jnp.bfloat16)],
        compiler_params=_cparams(),
    )(x, w, bvec)


# ----------------------------------------------------------------------------
# Decoder stage (ConvTranspose2d -> [concat folded into first block] -> blocks)
# ----------------------------------------------------------------------------
def _zero_interleave(x, sh, sw):
    """ConvTranspose2d(stride (sh,sw), k=3, p=1, out_pad=(sh-1,sw-1)) equals a
    standard pad-1 3x3 conv (re-laid-out weights) over the input placed at the
    even positions of an (sh*H, sw*W) zero canvas."""
    N, C, H, W = x.shape
    if sw > 1:
        parts = [x] + [jnp.zeros_like(x)] * (sw - 1)
        x = jnp.stack(parts, axis=-1).reshape(N, C, H, W * sw)
    if sh > 1:
        parts = [x] + [jnp.zeros_like(x)] * (sh - 1)
        x = jnp.stack(parts, axis=-2).reshape(N, C, H * sh, x.shape[-1])
    return x


def res_decoder_block(x, skip, dp, H, W, stride):
    N, Cin, _ = x.shape
    sh, sw = stride
    H2, W2 = H * sh, W * sw
    up = _zero_interleave(x.reshape(N, Cin, H, W), sh, sw).reshape(N, Cin, H2 * W2)
    h = conv3x3_bn_relu(up, dp["w1"], dp["b1"], H2, W2)   # ConvTranspose2d + BN + ReLU
    assert skip.shape[0] == N and skip.shape[2] == H2 * W2
    blocks = dp["blocks"]
    h = conv_block_res(h, blocks[0], H2, W2, x2=skip)     # torch.cat fused in-kernel
    for bp in blocks[1:]:
        h = conv_block_res(h, bp, H2, W2)
    return h


# ----------------------------------------------------------------------------
# Full DeepUnet forward (encoder -> intermediate -> decoder), NCHW in / out
# ----------------------------------------------------------------------------
def deep_unet_forward(params, x_nchw, kernel_size):
    N, C, H, W = x_nchw.shape
    kh, kw = kernel_size
    x = x_nchw.reshape(N, C, H * W)        # lanes = flattened spatial axis
    pre = params["bn0"]                    # folded input BatchNorm, fused into block 0

    concat_tensors, concat_sizes = [], []
    h, w = H, W
    for layer in params["encoder"]:        # ResEncoderBlock i
        for bp in layer["blocks"]:
            x = conv_block_res(x, bp, h, w, pre=pre)
            pre = None
        concat_tensors.append(x)           # pre-pool activation ("_" in PyTorch)
        concat_sizes.append((h, w))
        Cc = x.shape[1]
        pooled = (x.astype(jnp.float32)
                  .reshape(N, Cc, h // kh, kh, w // kw, kw).mean(axis=(3, 5)))
        h, w = h // kh, w // kw
        x = pooled.astype(jnp.bfloat16).reshape(N, Cc, h * w)

    for layer in params["intermediate"]:   # ResEncoderBlock with kernel_size=None
        for bp in layer["blocks"]:
            x = conv_block_res(x, bp, h, w)

    for di, dp in enumerate(params["decoder"]):
        x = res_decoder_block(x, concat_tensors[-1 - di], dp, h, w, (kh, kw))
        h, w = concat_sizes[-1 - di]

    return x.astype(jnp.float32).reshape(N, x.shape[1], h, w)


# ----------------------------------------------------------------------------
# Parameter construction (deterministic, synthetic) and packing for the kernels
# ----------------------------------------------------------------------------
def _init_bn(key, c):
    k1, k2, k3, k4 = jax.random.split(key, 4)
    return dict(
        gamma=1.0 + 0.1 * jax.random.normal(k1, (c,), jnp.float32),
        beta=0.1 * jax.random.normal(k2, (c,), jnp.float32),
        mean=0.1 * jax.random.normal(k3, (c,), jnp.float32),
        var=jax.random.uniform(k4, (c,), jnp.float32, 0.5, 1.5),
    )


def _init_block(key, cin, cout):
    ks = jax.random.split(key, 6)
    p = dict(
        w1=0.1 * jax.random.normal(ks[0], (cout, cin, 3, 3), jnp.float32),
        bn1=_init_bn(ks[1], cout),
        w2=0.1 * jax.random.normal(ks[2], (cout, cout, 3, 3), jnp.float32),
        bn2=_init_bn(ks[3], cout),
    )
    if cin != cout:  # 1x1 shortcut conv (with bias, nn.Conv2d default)
        p["wsc"] = 0.1 * jax.random.normal(ks[4], (cout, cin), jnp.float32)
        p["bsc"] = 0.1 * jax.random.normal(ks[5], (cout,), jnp.float32)
    return p


def init_deep_unet_params(key, in_channels, en_de_layers, inter_layers, n_blocks,
                          en_out_channels):
    k_bn, k_enc, k_int, k_dec = jax.random.split(key, 4)
    params = {"bn0": _init_bn(k_bn, in_channels)}

    enc, cin, cout = [], in_channels, en_out_channels
    for ek in jax.random.split(k_enc, en_de_layers):
        bks = jax.random.split(ek, n_blocks)
        blocks = [_init_block(bks[0], cin, cout)]
        blocks += [_init_block(bks[j], cout, cout) for j in range(1, n_blocks)]
        enc.append({"blocks": blocks})
        cin, cout = cout, cout * 2
    params["encoder"] = enc
    out_channel = cout                      # == en_out_channels * 2**en_de_layers

    inter = []
    for i, ik in enumerate(jax.random.split(k_int, inter_layers)):
        bks = jax.random.split(ik, n_blocks)
        c0 = out_channel // 2 if i == 0 else out_channel
        blocks = [_init_block(bks[0], c0, out_channel)]
        blocks += [_init_block(bks[j], out_channel, out_channel)
                   for j in range(1, n_blocks)]
        inter.append({"blocks": blocks})
    params["intermediate"] = inter

    dec, dcin = [], out_channel
    for dk in jax.random.split(k_dec, en_de_layers):
        dcout = dcin // 2
        ks = jax.random.split(dk, 2 + n_blocks)
        # `wt` holds the ConvTranspose2d kernel in its equivalent standard-conv
        # layout:  wt[o, i, ky, kx] == W_convT[i, o, 2 - ky, 2 - kx].
        blocks = [_init_block(ks[2], 2 * dcout, dcout)]
        blocks += [_init_block(ks[2 + j], dcout, dcout) for j in range(1, n_blocks)]
        dec.append(dict(
            wt=0.1 * jax.random.normal(ks[0], (dcout, dcin, 3, 3), jnp.float32),
            bn1=_init_bn(ks[1], dcout),
            blocks=blocks,
        ))
        dcin = dcout
    params["decoder"] = dec
    return params


def _fold_bn(bn):
    scale = bn["gamma"] / jnp.sqrt(bn["var"] + EPS)
    return scale, bn["beta"] - bn["mean"] * scale


def _pack_conv3x3(w, scale):
    """(Cout, Cin, 3, 3) -> (Cout, 9*Cin) bf16; rows pre-scaled by the folded BN
    scale; column order (dy*3 + dx)*Cin + cin (matching the im2col rows)."""
    cout, cin = w.shape[0], w.shape[1]
    wp = jnp.transpose(w, (0, 2, 3, 1)).reshape(cout, 9 * cin) * scale[:, None]
    return wp.astype(jnp.bfloat16)


def _pack_channel_pair(a, b, extra=None):
    """Pack per-channel vectors into one (C, 8) f32 operand (single small DMA)."""
    c = a.shape[0]
    v = jnp.zeros((c, 8), jnp.float32).at[:, 0].set(a).at[:, 1].set(b)
    if extra is not None:
        v = v.at[:, 2].set(extra)
    return v


def _prep_block(b):
    s1, b1 = _fold_bn(b["bn1"])
    s2, b2 = _fold_bn(b["bn2"])
    out = {"w1": _pack_conv3x3(b["w1"], s1), "w2": _pack_conv3x3(b["w2"], s2)}
    if "wsc" in b:
        out["wsc"] = b["wsc"].astype(jnp.bfloat16)
        out["cvec"] = _pack_channel_pair(b1, b2, b["bsc"])
    else:
        out["cvec"] = _pack_channel_pair(b1, b2)
    return out


def prepare_params(raw):
    s0, b0 = _fold_bn(raw["bn0"])
    prepped = {"bn0": _pack_channel_pair(s0, b0)}
    prepped["encoder"] = [{"blocks": [_prep_block(b) for b in l["blocks"]]}
                          for l in raw["encoder"]]
    prepped["intermediate"] = [{"blocks": [_prep_block(b) for b in l["blocks"]]}
                               for l in raw["intermediate"]]
    dec = []
    for d in raw["decoder"]:
        s, bb = _fold_bn(d["bn1"])
        dec.append({"w1": _pack_conv3x3(d["wt"], s),
                    "b1": _pack_channel_pair(bb, jnp.zeros_like(bb)),
                    "blocks": [_prep_block(b) for b in d["blocks"]]})
    prepped["decoder"] = dec
    return prepped


# ----------------------------------------------------------------------------
# Pure-JAX/XLA reference (bf16 roundings mirrored) for the tolerance check
# ----------------------------------------------------------------------------
def _bf(x):
    return x.astype(jnp.bfloat16).astype(jnp.float32)


def _ref_conv3x3(x, w):
    return jax.lax.conv_general_dilated(
        _bf(x), _bf(w), window_strides=(1, 1), padding=((1, 1), (1, 1)),
        dimension_numbers=("NCHW", "OIHW", "NCHW"))


def _ref_block(x, b, pre=None):
    s1, b1 = _fold_bn(b["bn1"])
    s2, b2 = _fold_bn(b["bn2"])
    xin = x if pre is None else x * pre[0][None, :, None, None] + pre[1][None, :, None, None]
    h = jax.nn.relu(_ref_conv3x3(xin, b["w1"] * s1[:, None, None, None])
                    + b1[None, :, None, None])
    h = jax.nn.relu(_ref_conv3x3(h, b["w2"] * s2[:, None, None, None])
                    + b2[None, :, None, None])
    if "wsc" in b:
        h = h + jnp.einsum("oc,nchw->nohw", _bf(b["wsc"]), _bf(xin)) \
              + b["bsc"][None, :, None, None]
    else:
        h = h + xin
    return _bf(h)


def deep_unet_reference(raw, x, kernel_size):
    kh, kw = kernel_size
    pre = _fold_bn(raw["bn0"])
    h = x
    concat = []
    for layer in raw["encoder"]:
        for bp in layer["blocks"]:
            h = _ref_block(h, bp, pre=pre)
            pre = None
        concat.append(h)
        N, C, H, W = h.shape
        h = _bf(h.reshape(N, C, H // kh, kh, W // kw, kw).mean(axis=(3, 5)))
    for layer in raw["intermediate"]:
        for bp in layer["blocks"]:
            h = _ref_block(h, bp)
    for i, dp in enumerate(raw["decoder"]):
        s, bb = _fold_bn(dp["bn1"])
        up = _zero_interleave(h, kh, kw)
        u = _bf(jax.nn.relu(_ref_conv3x3(up, dp["wt"] * s[:, None, None, None])
                            + bb[None, :, None, None]))
        h = jnp.concatenate([u, concat[-1 - i]], axis=1)
        for bp in dp["blocks"]:
            h = _ref_block(h, bp)
    return h


# ----------------------------------------------------------------------------
if __name__ == "__main__":
    _detect_roll_convention()

    key = jax.random.PRNGKey(0)
    k_x, k_p = jax.random.split(key)

    # Small configuration consistent with DeepUnet(__init__):
    B, C_in, H, W = 2, 4, 16, 16            # NCHW input; in_size = W = 16
    en_de_layers, inter_layers, n_blocks = 2, 2, 2
    en_out_channels = 8
    kernel_size = (2, 2)

    x = jax.random.normal(k_x, (B, C_in, H, W), jnp.float32)
    raw = init_deep_unet_params(k_p, C_in, en_de_layers, inter_layers, n_blocks,
                                en_out_channels)
    params = prepare_params(raw)

    fwd = jax.jit(lambda p, inp: deep_unet_forward(p, inp, kernel_size))
    y = jax.block_until_ready(fwd(params, x))

    # DeepUnet maps (B, C_in, H, W) -> (B, en_out_channels, H, W).
    assert y.shape == (B, en_out_channels, H, W), y.shape
    assert bool(jnp.all(jnp.isfinite(y)))

    # Tolerance check against the pure-JAX reference (bf16 roundings mirrored).
    y_ref = jax.jit(lambda r, inp: deep_unet_reference(r, inp, kernel_size))(raw, x)
    err = float(jnp.max(jnp.abs(y - y_ref)))
    ref_mag = float(jnp.max(jnp.abs(y_ref)))
    assert err <= 5e-2 * (1.0 + ref_mag), (err, ref_mag)

    print("KERNEL_OK")
</pallas_src>

<mosaic_0001>
module attributes {stable_mosaic.version = 11 : i64} {
  func.func @k(%arg0: memref<1x128xf32, #tpu.memory_space<vmem>>, %arg1: memref<1x128xf32, #tpu.memory_space<vmem>>) attributes {dimension_semantics = [], scalar_prefetch = 0 : i64, scratch_operands = 0 : i64, tpu.core_type = #tpu.core_type<tc>} {
    %c0 = arith.constant 0 : index
    %c0_0 = arith.constant 0 : index
    %0 = vector.load %arg0[%c0, %c0_0] : memref<1x128xf32, #tpu.memory_space<vmem>>, vector<1x128xf32>
    %c1_i32 = arith.constant 1 : i32
    %1 = tpu.dynamic_rotate %0 by %c1_i32 dim 1 : vector<1x128xf32>, i32 -> vector<1x128xf32>
    %c0_1 = arith.constant 0 : index
    %c0_2 = arith.constant 0 : index
    %2 = vector.load %arg1[%c0_1, %c0_2] : memref<1x128xf32, #tpu.memory_space<vmem>>, vector<1x128xf32>
    tpu.vector_store %arg1[%c0_1, %c0_2], %1 {strides = array<i32>} : memref<1x128xf32, #tpu.memory_space<vmem>>, vector<1x128xf32>,
    return
  }
}

</mosaic_0001>

<llo_original>
// kernel: tpu_custom_call.1
$region0: #{tpu_custom_call.1}
  #allocation0 [shape = 'u32[]', space=smem, size = 0x4, offset = 0x4, fixed_abs, tag = 'smem constant byte address 0x4 - core index']
  #allocation1 [shape = 'u32[144,128]{1,0:T(1,128)}', space=vmem, size = 0x12000, scoped, tag = 'internal scratch']
  %s0 = inlined_call_operand.hbm [shape: f32[1,128], index: 0, kind: input, shape index: {}]
  %s1 = inlined_call_operand.hbm [shape: f32[1,128], index: 1, kind: output, shape index: {}]
  %s2 = sld [smem:[#allocation0]]
  $region18: #{tpu_custom_call.1} parent=0
    _
  %s4 = ssub.s32 1, %s2
  %s5 = scalar_select 0, %s4, %s2
  $region1: #{tpu_custom_call.1} parent=0
    #allocation2 [shape = 'u8[512]{0}', space=vmem, size = 0x400, scoped, tag = 'input window, operand 0, single buffered']
    #allocation3 [shape = 's32[1]{0}', space=sflag, size = 0x4, scoped, tag = 'scoped memory for tpu_custom_call.1']
    #allocation4 [shape = 's32[1]{0}', space=sflag, size = 0x4, scoped, tag = 'scoped memory for tpu_custom_call.1']
    #allocation5 [shape = 'u8[512]{0}', space=vmem, size = 0x400, scoped, tag = 'output window, operand 0, single buffered']
    %6 = vsyncpa [#allocation3], 0
    %7 = vsyncpa [#allocation4], 0
    // Predicated region
    $region2: #{tpu_custom_call.1} parent=1 // pred_check
      _
    $region3: #{tpu_custom_call.1} parent=1 // pred_check_branch
      %9 = sbr.rel (0) target = $region5
    $region4: #{tpu_custom_call.1} parent=1 // pred_region
      %s11 = ssub.s32 16, 16
      %12 = vsyncadd [#allocation3], %s11
      %s14 = sshll.u32 [#allocation2], 4
      %s15 = int_to_ptr.vmem [resolvable:$true] %s14
      %17 = dma.hbm_to_vmem [thread:$0]  %s0, 16, %s15, [#allocation3]
    $region5: #{tpu_custom_call.1} parent=1 // pred_fallthru
      _
    // Predicated region
    $region6: #{tpu_custom_call.1} parent=1 // pred_check
      _
    $region7: #{tpu_custom_call.1} parent=1 // pred_check_branch
      %19 = sbr.rel (0) target = $region9
    $region8: #{tpu_custom_call.1} parent=1 // pred_region
      %20 = dma.done [#allocation3], 16
    $region9: #{tpu_custom_call.1} parent=1 // pred_fallthru
      _
    %v21 = vld [vmem:[#allocation2] sm:$0x1]
    %22 = vrot.lane.b32.xlu0 %v21, 1
    %v23 = vpop.permute.xlu0 %22
    %24 = vst [vmem:[#allocation5] sm:$0x1] %v23
    // Predicated region
    $region10: #{tpu_custom_call.1} parent=1 // pred_check
      _
    $region11: #{tpu_custom_call.1} parent=1 // pred_check_branch
      %26 = sbr.rel (0) target = $region13
    $region12: #{tpu_custom_call.1} parent=1 // pred_region
      %s28 = ssub.s32 16, 16
      %29 = vsyncadd [#allocation4], %s28
      %s31 = sshll.u32 [#allocation5], 4
      %s32 = int_to_ptr.vmem [resolvable:$true] %s31
      %34 = dma.vmem_to_hbm [thread:$0]  %s32, 16, %s1, [#allocation4]
    $region13: #{tpu_custom_call.1} parent=1 // pred_fallthru
      _
    // Predicated region
    $region14: #{tpu_custom_call.1} parent=1 // pred_check
      _
    $region15: #{tpu_custom_call.1} parent=1 // pred_check_branch
      %36 = sbr.rel (0) target = $region17
    $region16: #{tpu_custom_call.1} parent=1 // pred_region
      %37 = dma.done [#allocation4], 16
    $region17: #{tpu_custom_call.1} parent=1 // pred_fallthru
      _
    %38 = vsyncpa [#allocation3], 1
    %39 = vsyncpa [#allocation4], 1

</llo_original>
